<compile_context>
chip_gen: v7x
topology: tpu7x:2x2x1
jax: 0.10.0
libtpu: 0.0.40
codegen_flags: <defaults>
</compile_context>

<pallas_src>
import math

import jax
import jax.numpy as jnp
from jax.experimental import pallas as pl
from jax.experimental.pallas import tpu as pltpu


def _add_repeat_kernel(t_ref, d_ref, o_ref):
    # vertices = template + displace, computed once per grid step, then written
    # TB times along the row axis of the (TB*R, C) output block.
    s = t_ref[...] + d_ref[...]                    # (R, C)
    tb = o_ref.shape[0] // s.shape[0]
    if tb == 1:
        o_ref[...] = s
    else:
        o_ref[...] = jnp.tile(s, (tb, 1))          # (TB*R, C), one big store


def _choose_repeats_per_step(R, C, batch_size, itemsize):
    """Pick TB (repeats fused per grid step)."""
    total_rows = batch_size * R
    # ~4 MiB output-tile target: big enough for the HBM-write roofline, small
    # enough (x2 for double buffering) for v7x's 64 MiB physical VMEM.
    budget_rows = max(1, (4 << 20) // max(1, C * itemsize))
    if total_rows <= max(budget_rows, 8):
        # Whole output fits comfortably: single grid step, full-output block.
        return batch_size
    # Otherwise align TB*R to 8 sublanes so stores are full-width / unmasked.
    align = 8 // math.gcd(R, 8)
    tb = (budget_rows // R) // align * align
    tb = max(align, tb)
    return min(tb, batch_size)


def model_forward(template_params, displace, batch_size):
    """Pallas equivalent of Model.forward(): (template+displace).repeat(B, 1)."""
    R, C = template_params.shape
    dtype = template_params.dtype
    itemsize = jnp.dtype(dtype).itemsize
    # TODO(synk): also tile along R if a single (R, C) template block is itself
    # too large for VMEM (R*C*itemsize >> 8 MiB); not needed at these shapes.

    tb = _choose_repeats_per_step(R, C, batch_size, itemsize)
    grid = (pl.cdiv(batch_size, tb),)

    out_shape = jax.ShapeDtypeStruct((batch_size * R, C), dtype)

    return pl.pallas_call(
        _add_repeat_kernel,
        out_shape=out_shape,
        grid_spec=pltpu.PrefetchScalarGridSpec(
            num_scalar_prefetch=0,
            grid=grid,
            in_specs=[
                # Full (R, C) inputs; identical block every step (block index is
                # constant, so the pipeline keeps it resident -> no re-DMA).
                pl.BlockSpec((R, C), lambda b: (0, 0)),
                pl.BlockSpec((R, C), lambda b: (0, 0)),
            ],
            # b-th (TB*R, C) output slab: TB repeats fused into one large,
            # sublane/lane-dense store per grid step.
            out_specs=pl.BlockSpec((tb * R, C), lambda b: (b, 0)),
        ),
        compiler_params=pltpu.CompilerParams(
            # Repeat axis is fully independent: megacore split on v7x,
            # measured no-op on single-TC v5e/v6e.
            dimension_semantics=("parallel",),
        ),
    )(template_params, displace)


if __name__ == "__main__":
    key = jax.random.PRNGKey(0)

    # Small shapes consistent with the module: template_params is a 2-D buffer
    # (flattened mesh vertex parameters), repeated along dim 0 by batch_size.
    R, C = 1, 384          # template rows / feature width (C is the lane axis)
    batch_size = 4

    template_params = jax.random.normal(key, (R, C), dtype=jnp.float32)
    # nn.Parameter(torch.zeros_like(template_params)) -> deterministic zeros.
    displace = jnp.zeros_like(template_params)

    out = model_forward(template_params, displace, batch_size)
    out = jax.block_until_ready(out)

    # Reference check (plain JAX) for correctness.
    ref = jnp.tile(template_params + displace, (batch_size, 1))
    assert out.shape == (batch_size * R, C)
    assert jnp.allclose(out, ref)

    print("KERNEL_OK")
</pallas_src>

<mosaic_0001>
module attributes {stable_mosaic.version = 11 : i64} {
  func.func @_add_repeat_kernel(%arg0: i32, %arg1: memref<1x384xf32, #tpu.memory_space<vmem>>, %arg2: memref<1x384xf32, #tpu.memory_space<vmem>>, %arg3: memref<4x384xf32, #tpu.memory_space<vmem>>) attributes {dimension_semantics = [#tpu.dimension_semantics<parallel>], iteration_bounds = array<i64: 1>, scalar_prefetch = 0 : i64, scratch_operands = 0 : i64, tpu.core_type = #tpu.core_type<tc>, window_params = [{pipeline_mode = #tpu.pipeline_mode<synchronous>, transform_indices = @transform_0, window_bounds = array<i64: 1, 384>}, {pipeline_mode = #tpu.pipeline_mode<synchronous>, transform_indices = @transform_1, window_bounds = array<i64: 1, 384>}, {transform_indices = @transform_2, window_bounds = array<i64: 4, 384>}]} {
    %c0 = arith.constant 0 : index
    %c0_0 = arith.constant 0 : index
    %0 = vector.load %arg1[%c0, %c0_0] : memref<1x384xf32, #tpu.memory_space<vmem>>, vector<1x384xf32>
    %c0_1 = arith.constant 0 : index
    %c0_2 = arith.constant 0 : index
    %1 = vector.load %arg2[%c0_1, %c0_2] : memref<1x384xf32, #tpu.memory_space<vmem>>, vector<1x384xf32>
    %2 = arith.addf %0, %1 : vector<1x384xf32>
    %3 = tpu.concatenate %2, %2, %2, %2 in 0 : vector<1x384xf32>, vector<1x384xf32>, vector<1x384xf32>, vector<1x384xf32> -> vector<4x384xf32>
    %c0_3 = arith.constant 0 : index
    %c0_4 = arith.constant 0 : index
    %4 = vector.load %arg3[%c0_3, %c0_4] : memref<4x384xf32, #tpu.memory_space<vmem>>, vector<4x384xf32>
    tpu.vector_store %arg3[%c0_3, %c0_4], %3 {strides = array<i32>} : memref<4x384xf32, #tpu.memory_space<vmem>>, vector<4x384xf32>,
    return
  }
  func.func @transform_0(%arg0: i32) -> (i32, i32) {
    %c0_i32 = arith.constant 0 : i32
    %c0_i32_0 = arith.constant 0 : i32
    %c0_i32_1 = arith.constant 0 : i32
    return %c0_i32, %c0_i32_0 : i32, i32
  }
  func.func @transform_1(%arg0: i32) -> (i32, i32) {
    %c0_i32 = arith.constant 0 : i32
    %c0_i32_0 = arith.constant 0 : i32
    %c0_i32_1 = arith.constant 0 : i32
    return %c0_i32, %c0_i32_0 : i32, i32
  }
  func.func @transform_2(%arg0: i32) -> (i32, i32) {
    %c0_i32 = arith.constant 0 : i32
    %c0_i32_0 = arith.constant 0 : i32
    return %arg0, %c0_i32 : i32, i32
  }
}

</mosaic_0001>

<llo_original>
// kernel: tpu_custom_call.1
$region0: #{tpu_custom_call.1}
  #allocation0 [shape = 'u32[]', space=smem, size = 0x4, offset = 0x4, fixed_abs, tag = 'smem constant byte address 0x4 - core index']
  #allocation1 [shape = 'u32[144,128]{1,0:T(1,128)}', space=vmem, size = 0x12000, scoped, tag = 'internal scratch']
  %s0 = inlined_call_operand.hbm [shape: f32[1,384], index: 0, kind: input, shape index: {}]
  %s1 = inlined_call_operand.vmem [shape: f32[1,384], index: 1, kind: input, shape index: {}]
  %s2 = inlined_call_operand.hbm [shape: f32[4,384], index: 2, kind: output, shape index: {}]
  %s3 = sld [smem:[#allocation0]]
  $region22: #{tpu_custom_call.1} parent=0
    _
  %s5 = ssub.s32 1, %s3
  %s6 = scalar_select 0, %s5, %s3
  $region1: #{tpu_custom_call.1} parent=0
    #allocation2 [shape = 'u8[1536]{0}', space=vmem, size = 0x800, scoped, tag = 'input window, operand 0, single buffered']
    #allocation3 [shape = 's32[1]{0}', space=sflag, size = 0x4, scoped, tag = 'scoped memory for tpu_custom_call.1']
    #allocation4 [shape = 's32[1]{0}', space=sflag, size = 0x4, scoped, tag = 'scoped memory for tpu_custom_call.1']
    #allocation5 [shape = 'u8[6144]{0}', space=vmem, size = 0x1800, scoped, tag = 'output window, operand 0, single buffered']
    %7 = vsyncpa [#allocation3], 0
    %8 = vsyncpa [#allocation4], 0
    // Predicated region
    $region2: #{tpu_custom_call.1} parent=1 // pred_check
      _
    $region3: #{tpu_custom_call.1} parent=1 // pred_check_branch
      %10 = sbr.rel (0) target = $region5
    $region4: #{tpu_custom_call.1} parent=1 // pred_region
      %s12 = ssub.s32 48, 48
      %13 = vsyncadd [#allocation3], %s12
      %s15 = sshll.u32 [#allocation2], 4
      %s16 = int_to_ptr.vmem [resolvable:$true] %s15
      %18 = dma.hbm_to_vmem [thread:$0]  %s0, 48, %s16, [#allocation3]
    $region5: #{tpu_custom_call.1} parent=1 // pred_fallthru
      _
    // Predicated region
    $region6: #{tpu_custom_call.1} parent=1 // pred_check
      _
    $region7: #{tpu_custom_call.1} parent=1 // pred_check_branch
      %20 = sbr.rel (0) target = $region9
    $region8: #{tpu_custom_call.1} parent=1 // pred_region
      _
    $region9: #{tpu_custom_call.1} parent=1 // pred_fallthru
      _
    // Predicated region
    $region10: #{tpu_custom_call.1} parent=1 // pred_check
      _
    $region11: #{tpu_custom_call.1} parent=1 // pred_check_branch
      %22 = sbr.rel (0) target = $region13
    $region12: #{tpu_custom_call.1} parent=1 // pred_region
      %23 = dma.done [#allocation3], 48
    $region13: #{tpu_custom_call.1} parent=1 // pred_fallthru
      _
    %v24 = vld [vmem:[#allocation2] sm:$0x7]
    %v25 = vld [vmem:[%s1] sm:$0x7]
    %v26 = vadd.f32 %v24, %v25
    %v28 = vlaneseq
    %v29 = vshrl.u32 %v28, 7
    %v30 = vsub.s32 0, %v29
    %v31 = vrot.slane %v26, %v30
    %v32 = vlaneseq
    %v33 = vshrl.u32 %v32, 7
    %v34 = vsub.s32 1, %v33
    %v35 = vrot.slane %v26, %v34
    %v36 = vlaneseq
    %v37 = vshrl.u32 %v36, 7
    %v38 = vsub.s32 2, %v37
    %v39 = vrot.slane %v26, %v38
    %vm43 = vcmask 1041408
    %v44 = vsel %vm43, %v31, %v31
    %v45 = vsel %vm43, %v35, %v35
    %v46 = vsel %vm43, %v39, %v39
    %vm47 = vcmask 1042432
    %v48 = vsel %vm47, %v44, %v31
    %v49 = vsel %vm47, %v45, %v35
    %v50 = vsel %vm47, %v46, %v39
    %v53 = vcombine.low %v48, %v49
    %55 = vst [vmem:[#allocation5] sm:$0xff] %v53
    %56 = vst [vmem:[#allocation5 + $0x8] sm:$0xf] %v50
    // Predicated region
    $region14: #{tpu_custom_call.1} parent=1 // pred_check
      _
    $region15: #{tpu_custom_call.1} parent=1 // pred_check_branch
      %58 = sbr.rel (0) target = $region17
    $region16: #{tpu_custom_call.1} parent=1 // pred_region
      %s60 = ssub.s32 192, 192
      %61 = vsyncadd [#allocation4], %s60
      %s63 = sshll.u32 [#allocation5], 4
      %s64 = int_to_ptr.vmem [resolvable:$true] %s63
      %66 = dma.vmem_to_hbm [thread:$0]  %s64, 192, %s2, [#allocation4]
    $region17: #{tpu_custom_call.1} parent=1 // pred_fallthru
      _
    // Predicated region
    $region18: #{tpu_custom_call.1} parent=1 // pred_check
      _
    $region19: #{tpu_custom_call.1} parent=1 // pred_check_branch
      %68 = sbr.rel (0) target = $region21
    $region20: #{tpu_custom_call.1} parent=1 // pred_region
      %69 = dma.done [#allocation4], 192
    $region21: #{tpu_custom_call.1} parent=1 // pred_fallthru
      _
    %70 = vsyncpa [#allocation3], 1
    %71 = vsyncpa [#allocation4], 1

</llo_original>
